<compile_context>
chip_gen: v7x
topology: tpu7x:2x2x1
jax: 0.10.0
libtpu: 0.0.40
codegen_flags: <defaults>
</compile_context>

<pallas_src>
import jax
import jax.numpy as jnp
from jax.experimental import pallas as pl
from jax.experimental.pallas import tpu as pltpu


# --------------------------------------------------------------------------- #
# helpers
# --------------------------------------------------------------------------- #
def _cdiv(a, b):
    return (a + b - 1) // b


def _round_up(x, m):
    return _cdiv(x, m) * m


def _vmem_budget_bytes():
    """~0.75x of physical per-TensorCore VMEM (48 MiB v7x, 96 MiB v5e/v6e)."""
    try:
        cap = int(pltpu.get_tpu_info().vmem_capacity_bytes)
    except Exception:
        # Hardware query unavailable: assume the smallest generation (v7x, 64 MiB).
        cap = 64 * 1024 * 1024
    return (cap * 3) // 4


def _pick_hidden_tile(Hp, target=512):
    """Largest divisor of Hp that is a multiple of 256 (MXU-N on v6e/v7x) and
    <= target; fall back to 128-multiples (Hp is always a 128-multiple)."""
    for step in (256, 128):
        t = (min(target, Hp) // step) * step
        while t >= step:
            if Hp % t == 0:
                return t
            t -= step
    return 128


# --------------------------------------------------------------------------- #
# kernels
# --------------------------------------------------------------------------- #
def ffn_fused_kernel(x_ref, w1_ref, b1_ref, w2_ref, b2_ref, o_ref):
    """Whole FFN in one grid step (weights fully VMEM-resident, n_h == 1)."""
    hidden = jnp.maximum(
        jnp.dot(x_ref[...].astype(w1_ref.dtype), w1_ref[...],
                preferred_element_type=jnp.float32) + b1_ref[...], 0.0)
    o_ref[...] = (jnp.dot(hidden.astype(w2_ref.dtype), w2_ref[...],
                          preferred_element_type=jnp.float32)
                  + b2_ref[...]).astype(o_ref.dtype)


def ffn_stream_f32out_kernel(x_ref, w1_ref, b1_ref, w2_ref, b2_ref, o_ref):
    """Streamed hidden dim; f32 output block is resident across h -> accumulate
    directly into o_ref (no scratch, no finalize copy)."""
    h_idx = pl.program_id(1)

    @pl.when(h_idx == 0)
    def _init():
        o_ref[...] = jnp.zeros_like(o_ref)

    hidden = jnp.maximum(
        jnp.dot(x_ref[...].astype(w1_ref.dtype), w1_ref[...],
                preferred_element_type=jnp.float32) + b1_ref[...], 0.0)
    o_ref[...] += jnp.dot(hidden.astype(w2_ref.dtype), w2_ref[...],
                          preferred_element_type=jnp.float32)

    @pl.when(h_idx == pl.num_programs(1) - 1)
    def _finalize():
        o_ref[...] += b2_ref[...]


def ffn_stream_acc_kernel(x_ref, w1_ref, b1_ref, w2_ref, b2_ref, o_ref, acc_ref):
    """Streamed hidden dim with an f32 VMEM accumulator (non-f32 output dtype)."""
    h_idx = pl.program_id(1)

    @pl.when(h_idx == 0)
    def _init():
        acc_ref[...] = jnp.zeros_like(acc_ref)

    hidden = jnp.maximum(
        jnp.dot(x_ref[...].astype(w1_ref.dtype), w1_ref[...],
                preferred_element_type=jnp.float32) + b1_ref[...], 0.0)
    acc_ref[...] += jnp.dot(hidden.astype(w2_ref.dtype), w2_ref[...],
                            preferred_element_type=jnp.float32)

    @pl.when(h_idx == pl.num_programs(1) - 1)
    def _finalize():
        o_ref[...] = (acc_ref[...] + b2_ref[...]).astype(o_ref.dtype)


# --------------------------------------------------------------------------- #
# wrapper
# --------------------------------------------------------------------------- #
def prepare_ffn_params(w1, b1, w2, b2):
    """Pad/lay out the weights ONCE (call at init, outside the hot path).

    w1: (n_embd, n_hidden), b1: (n_hidden,), w2: (n_hidden, n_output), b2: (n_output,).
    Feature dims are padded to 128-multiples (lane-dense, MXU friendly); the
    zero padding is exact through Linear/ReLU/Linear."""
    E, H = w1.shape
    H2, O = w2.shape
    assert H2 == H and b1.shape == (H,) and b2.shape == (O,)
    Ep, Hp, Op = _round_up(E, 128), _round_up(H, 128), _round_up(O, 128)

    w1p = w1 if (Ep == E and Hp == H) else jnp.pad(w1, ((0, Ep - E), (0, Hp - H)))
    w2p = w2 if (Hp == H and Op == O) else jnp.pad(w2, ((0, Hp - H), (0, Op - O)))
    b1p = (b1 if Hp == H else jnp.pad(b1, (0, Hp - H))).reshape(1, Hp)
    b2p = (b2 if Op == O else jnp.pad(b2, (0, Op - O))).reshape(1, Op)
    return {"w1": w1p, "b1": b1p, "w2": w2p, "b2": b2p,
            "n_embd": E, "n_output": O}


def final_feed_forward(x, params, *, batch_tile=None, hidden_tile=None):
    """x: (B, n_embd); params from prepare_ffn_params. Returns (B, n_output)."""
    w1p, b1p, w2p, b2p = params["w1"], params["b1"], params["w2"], params["b2"]
    E, O = params["n_embd"], params["n_output"]
    Ep, Hp = w1p.shape
    Op = w2p.shape[1]
    B = x.shape[0]
    assert x.shape[1] == E, "x feature dim must equal n_embd (unpadded)"

    out_dtype = x.dtype
    out_isz = x.dtype.itemsize
    x_isz = x.dtype.itemsize
    w1_isz, b1_isz = w1p.dtype.itemsize, b1p.dtype.itemsize
    w2_isz, b2_isz = w2p.dtype.itemsize, b2p.dtype.itemsize

    vmem_budget = _vmem_budget_bytes()

    # ---- hidden tiling: keep weights fully VMEM-resident whenever they fit ----
    # (input blocks are double-buffered by the pipeline, hence the 2x)
    weights_resident_bytes = 2 * (Ep * Hp * w1_isz + Hp * b1_isz
                                  + Hp * Op * w2_isz + Op * b2_isz)
    if hidden_tile is None:
        if weights_resident_bytes <= (6 * vmem_budget) // 10:
            hidden_tile = Hp                       # n_h == 1 -> fused kernel
        else:
            hidden_tile = _pick_hidden_tile(Hp, target=512)
    assert hidden_tile % 128 == 0 and Hp % hidden_tile == 0
    n_h = Hp // hidden_tile

    # ---- batch tiling: balanced tiles with minimal padding ---------------------
    if batch_tile is None:
        # When weights must be re-streamed per batch tile (n_h > 1), weight HBM
        # traffic scales with n_b -> use as large a batch tile as VMEM allows.
        max_bt = 256 if n_h == 1 else 1024
        n_bt = _cdiv(B, max_bt)
        batch_tile = _round_up(_cdiv(B, n_bt), 8)
    assert batch_tile % 8 == 0

    def footprint(bt):
        f = 2 * bt * Ep * x_isz                                        # x tile
        f += 2 * (Ep * hidden_tile * w1_isz + hidden_tile * b1_isz)    # W1 / b1
        f += 2 * (hidden_tile * Op * w2_isz + Op * b2_isz)             # W2 / b2
        f += 2 * bt * Op * out_isz                                     # out tile
        if n_h > 1 and out_dtype != jnp.float32:
            f += bt * Op * 4                                           # f32 acc
        return f

    while footprint(batch_tile) > vmem_budget and batch_tile > 8:
        batch_tile = max(8, _round_up(batch_tile // 2, 8))

    Bp = _round_up(B, batch_tile)
    n_b = Bp // batch_tile
    vmem_limit = int(min(vmem_budget, max(footprint(batch_tile) + (4 << 20),
                                          16 << 20)))

    # ---- per-call activation padding only (weights were padded at init) -------
    xp = x if (Bp == B and Ep == E) else jnp.pad(x, ((0, Bp - B), (0, Ep - E)))

    # ---- cost estimate reflecting real DMA traffic ----------------------------
    weight_bytes = (w1p.size * w1_isz + b1p.size * b1_isz
                    + w2p.size * w2_isz + b2p.size * b2_isz)
    weight_reads = n_b if n_h > 1 else 1
    cost = pl.CostEstimate(
        flops=2 * Bp * (Ep * Hp + Hp * Op),
        transcendentals=0,
        bytes_accessed=(xp.size * x_isz + weight_bytes * weight_reads
                        + Bp * Op * out_isz),
    )

    out_shape = jax.ShapeDtypeStruct((Bp, Op), out_dtype)

    if n_h == 1:
        # Fused kernel: weights are constant-index blocks (fetched once), no
        # accumulator, single epilogue. grid=(1,) for small batches.
        grid_spec = pltpu.PrefetchScalarGridSpec(
            num_scalar_prefetch=0,
            grid=(n_b,),
            in_specs=[
                pl.BlockSpec((batch_tile, Ep), lambda i: (i, 0)),   # x
                pl.BlockSpec((Ep, Hp), lambda i: (0, 0)),           # W1 (resident)
                pl.BlockSpec((1, Hp), lambda i: (0, 0)),            # b1 (resident)
                pl.BlockSpec((Hp, Op), lambda i: (0, 0)),           # W2 (resident)
                pl.BlockSpec((1, Op), lambda i: (0, 0)),            # b2 (resident)
            ],
            out_specs=pl.BlockSpec((batch_tile, Op), lambda i: (i, 0)),
        )
        out_p = pl.pallas_call(
            ffn_fused_kernel,
            out_shape=out_shape,
            grid_spec=grid_spec,
            compiler_params=pltpu.CompilerParams(
                dimension_semantics=("parallel",),
                vmem_limit_bytes=vmem_limit),
            cost_estimate=cost,
        )(xp, w1p, b1p, w2p, b2p)
    else:
        # Streamed hidden dim: reduction axis last, batch axis parallel.
        in_specs = [
            pl.BlockSpec((batch_tile, Ep), lambda i, h: (i, 0)),        # x
            pl.BlockSpec((Ep, hidden_tile), lambda i, h: (0, h)),       # W1 slab
            pl.BlockSpec((1, hidden_tile), lambda i, h: (0, h)),        # b1 slab
            pl.BlockSpec((hidden_tile, Op), lambda i, h: (h, 0)),       # W2 slab
            pl.BlockSpec((1, Op), lambda i, h: (0, 0)),                 # b2
        ]
        out_specs = pl.BlockSpec((batch_tile, Op), lambda i, h: (i, 0))
        if out_dtype == jnp.float32:
            kernel, scratch = ffn_stream_f32out_kernel, []
        else:
            kernel = ffn_stream_acc_kernel
            scratch = [pltpu.VMEM((batch_tile, Op), jnp.float32)]
        grid_spec = pltpu.PrefetchScalarGridSpec(
            num_scalar_prefetch=0,
            grid=(n_b, n_h),
            in_specs=in_specs,
            out_specs=out_specs,
            scratch_shapes=scratch,
        )
        out_p = pl.pallas_call(
            kernel,
            out_shape=out_shape,
            grid_spec=grid_spec,
            compiler_params=pltpu.CompilerParams(
                dimension_semantics=("parallel", "arbitrary"),
                vmem_limit_bytes=vmem_limit),
            cost_estimate=cost,
        )(xp, w1p, b1p, w2p, b2p)

    if (Bp, Op) != (B, O):
        out_p = out_p[:B, :O]
    return out_p


def reference(x, w1, b1, w2, b2):
    xf = x.astype(jnp.float32)
    h = jnp.maximum(xf @ w1.astype(jnp.float32) + b1, 0.0)
    return h @ w2.astype(jnp.float32) + b2


# --------------------------------------------------------------------------- #
# test
# --------------------------------------------------------------------------- #
if __name__ == "__main__":
    # Small shapes implied by the module: (batch, n_embd) -> (batch, n_output)
    B, n_embd, n_hidden, n_output = 64, 96, 256, 16

    key = jax.random.PRNGKey(0)
    kx, kw1, kb1, kw2, kb2 = jax.random.split(key, 5)

    x = jax.random.normal(kx, (B, n_embd), dtype=jnp.float32)

    # Deterministic init mimicking nn.Linear's uniform(-1/sqrt(fan_in), 1/sqrt(fan_in))
    lim1 = 1.0 / (n_embd ** 0.5)
    lim2 = 1.0 / (n_hidden ** 0.5)
    w1 = jax.random.uniform(kw1, (n_embd, n_hidden), minval=-lim1, maxval=lim1,
                            dtype=jnp.float32)
    b1 = jax.random.uniform(kb1, (n_hidden,), minval=-lim1, maxval=lim1,
                            dtype=jnp.float32)
    w2 = jax.random.uniform(kw2, (n_hidden, n_output), minval=-lim2, maxval=lim2,
                            dtype=jnp.float32)
    b2 = jax.random.uniform(kb2, (n_output,), minval=-lim2, maxval=lim2,
                            dtype=jnp.float32)

    ref = reference(x, w1, b1, w2, b2)

    # Weights padded/laid out ONCE, outside the per-call hot path.
    params_f32 = prepare_ffn_params(w1, b1, w2, b2)

    # 1) default tiles: weights VMEM-resident, fused kernel, grid=(1,)
    out = jax.block_until_ready(final_feed_forward(x, params_f32))
    assert out.shape == (B, n_output)
    assert jnp.allclose(out, ref, atol=1e-4, rtol=1e-4), "f32 fused mismatch"

    # 2) streamed-reduction path, f32 output accumulates directly into o_ref
    out_s = jax.block_until_ready(
        final_feed_forward(x, params_f32, batch_tile=32, hidden_tile=128))
    assert jnp.allclose(out_s, ref, atol=1e-4, rtol=1e-4), "f32 stream mismatch"

    # 3) bf16 weights/activations (MXU-friendly path), f32 accumulation inside
    params_bf16 = prepare_ffn_params(w1.astype(jnp.bfloat16), b1,
                                     w2.astype(jnp.bfloat16), b2)
    out_bf = jax.block_until_ready(
        final_feed_forward(x.astype(jnp.bfloat16), params_bf16))
    assert jnp.allclose(out_bf.astype(jnp.float32), ref, atol=5e-2, rtol=5e-2), \
        "bf16 fused mismatch"

    # 4) bf16 streamed path (exercises the f32 accumulator-scratch kernel)
    out_bf_s = jax.block_until_ready(
        final_feed_forward(x.astype(jnp.bfloat16), params_bf16,
                           batch_tile=32, hidden_tile=128))
    assert jnp.allclose(out_bf_s.astype(jnp.float32), ref, atol=5e-2, rtol=5e-2), \
        "bf16 stream mismatch"

    print("KERNEL_OK")
</pallas_src>

<mosaic_0001>
module attributes {stable_mosaic.version = 11 : i64} {
  func.func @ffn_fused_kernel(%arg0: i32, %arg1: memref<64x128xf32, #tpu.memory_space<vmem>>, %arg2: memref<128x256xf32, #tpu.memory_space<vmem>>, %arg3: memref<1x256xf32, #tpu.memory_space<vmem>>, %arg4: memref<256x128xf32, #tpu.memory_space<vmem>>, %arg5: memref<1x128xf32, #tpu.memory_space<vmem>>, %arg6: memref<64x128xf32, #tpu.memory_space<vmem>>) attributes {dimension_semantics = [#tpu.dimension_semantics<parallel>], iteration_bounds = array<i64: 1>, scalar_prefetch = 0 : i64, scratch_operands = 0 : i64, tpu.core_type = #tpu.core_type<tc>, window_params = [{transform_indices = @transform_0, window_bounds = array<i64: 64, 128>}, {pipeline_mode = #tpu.pipeline_mode<synchronous>, transform_indices = @transform_1, window_bounds = array<i64: 128, 256>}, {pipeline_mode = #tpu.pipeline_mode<synchronous>, transform_indices = @transform_2, window_bounds = array<i64: 1, 256>}, {pipeline_mode = #tpu.pipeline_mode<synchronous>, transform_indices = @transform_3, window_bounds = array<i64: 256, 128>}, {pipeline_mode = #tpu.pipeline_mode<synchronous>, transform_indices = @transform_4, window_bounds = array<i64: 1, 128>}, {transform_indices = @transform_5, window_bounds = array<i64: 64, 128>}]} {
    %c0 = arith.constant 0 : index
    %c0_0 = arith.constant 0 : index
    %0 = vector.load %arg1[%c0, %c0_0] : memref<64x128xf32, #tpu.memory_space<vmem>>, vector<64x128xf32>
    %c0_1 = arith.constant 0 : index
    %c0_2 = arith.constant 0 : index
    %1 = vector.load %arg2[%c0_1, %c0_2] : memref<128x256xf32, #tpu.memory_space<vmem>>, vector<128x256xf32>
    %cst = arith.constant dense<0.000000e+00> : vector<64x256xf32>
    %2 = tpu.matmul %0, %1, %cst {dimension_numbers = #tpu.dot_dimension_numbers<[1], [0], [0], [1], [0, 0, 1, 1], [], []>} : vector<64x128xf32>, vector<128x256xf32>, vector<64x256xf32> -> vector<64x256xf32>
    %c0_3 = arith.constant 0 : index
    %c0_4 = arith.constant 0 : index
    %3 = vector.load %arg3[%c0_3, %c0_4] : memref<1x256xf32, #tpu.memory_space<vmem>>, vector<1x256xf32>
    %4 = vector.broadcast %3 : vector<1x256xf32> to vector<64x256xf32>
    %5 = arith.addf %2, %4 : vector<64x256xf32>
    %cst_5 = arith.constant 0.000000e+00 : f32
    %6 = vector.broadcast %cst_5 : f32 to vector<64x256xf32>
    %7 = arith.maximumf %5, %6 : vector<64x256xf32>
    %c0_6 = arith.constant 0 : index
    %c0_7 = arith.constant 0 : index
    %8 = vector.load %arg4[%c0_6, %c0_7] : memref<256x128xf32, #tpu.memory_space<vmem>>, vector<256x128xf32>
    %cst_8 = arith.constant dense<0.000000e+00> : vector<64x128xf32>
    %9 = tpu.matmul %7, %8, %cst_8 {dimension_numbers = #tpu.dot_dimension_numbers<[1], [0], [0], [1], [0, 0, 1, 1], [], []>} : vector<64x256xf32>, vector<256x128xf32>, vector<64x128xf32> -> vector<64x128xf32>
    %c0_9 = arith.constant 0 : index
    %c0_10 = arith.constant 0 : index
    %10 = vector.load %arg5[%c0_9, %c0_10] : memref<1x128xf32, #tpu.memory_space<vmem>>, vector<1x128xf32>
    %11 = vector.broadcast %10 : vector<1x128xf32> to vector<64x128xf32>
    %12 = arith.addf %9, %11 : vector<64x128xf32>
    %c0_11 = arith.constant 0 : index
    %c0_12 = arith.constant 0 : index
    %13 = vector.load %arg6[%c0_11, %c0_12] : memref<64x128xf32, #tpu.memory_space<vmem>>, vector<64x128xf32>
    tpu.vector_store %arg6[%c0_11, %c0_12], %12 {strides = array<i32>} : memref<64x128xf32, #tpu.memory_space<vmem>>, vector<64x128xf32>,
    return
  }
  func.func @transform_0(%arg0: i32) -> (i32, i32) {
    %c0_i32 = arith.constant 0 : i32
    %c0_i32_0 = arith.constant 0 : i32
    return %arg0, %c0_i32 : i32, i32
  }
  func.func @transform_1(%arg0: i32) -> (i32, i32) {
    %c0_i32 = arith.constant 0 : i32
    %c0_i32_0 = arith.constant 0 : i32
    %c0_i32_1 = arith.constant 0 : i32
    return %c0_i32, %c0_i32_0 : i32, i32
  }
  func.func @transform_2(%arg0: i32) -> (i32, i32) {
    %c0_i32 = arith.constant 0 : i32
    %c0_i32_0 = arith.constant 0 : i32
    %c0_i32_1 = arith.constant 0 : i32
    return %c0_i32, %c0_i32_0 : i32, i32
  }
  func.func @transform_3(%arg0: i32) -> (i32, i32) {
    %c0_i32 = arith.constant 0 : i32
    %c0_i32_0 = arith.constant 0 : i32
    %c0_i32_1 = arith.constant 0 : i32
    return %c0_i32, %c0_i32_0 : i32, i32
  }
  func.func @transform_4(%arg0: i32) -> (i32, i32) {
    %c0_i32 = arith.constant 0 : i32
    %c0_i32_0 = arith.constant 0 : i32
    %c0_i32_1 = arith.constant 0 : i32
    return %c0_i32, %c0_i32_0 : i32, i32
  }
  func.func @transform_5(%arg0: i32) -> (i32, i32) {
    %c0_i32 = arith.constant 0 : i32
    %c0_i32_0 = arith.constant 0 : i32
    return %arg0, %c0_i32 : i32, i32
  }
}

</mosaic_0001>

<llo_original>
// kernel: tpu_custom_call.1
$region0: #{tpu_custom_call.1}
  #allocation0 [shape = 'u32[]', space=smem, size = 0x4, offset = 0x4, fixed_abs, tag = 'smem constant byte address 0x4 - core index']
  #allocation1 [shape = 'u32[144,128]{1,0:T(1,128)}', space=vmem, size = 0x12000, scoped, tag = 'internal scratch']
  %s0 = inlined_call_operand.hbm [shape: f32[64,128], index: 0, kind: input, shape index: {}]
  %s1 = inlined_call_operand.hbm [shape: f32[128,256], index: 1, kind: input, shape index: {}]
  %s2 = inlined_call_operand.vmem [shape: f32[1,256], index: 2, kind: input, shape index: {}]
  %s3 = inlined_call_operand.hbm [shape: f32[256,128], index: 3, kind: input, shape index: {}]
  %s4 = inlined_call_operand.vmem [shape: f32[1,128], index: 4, kind: input, shape index: {}]
  %s5 = inlined_call_operand.hbm [shape: f32[64,128], index: 5, kind: output, shape index: {}]
  %s6 = sld [smem:[#allocation0]]
  $region42: #{tpu_custom_call.1} parent=0
    _
  %s8 = ssub.s32 1, %s6
  %s9 = scalar_select 0, %s8, %s6
  $region1: #{tpu_custom_call.1} parent=0
    #allocation2 [shape = 'u8[32768]{0}', space=vmem, size = 0x8000, scoped, tag = 'input window, operand 0, single buffered']
    #allocation3 [shape = 's32[1]{0}', space=sflag, size = 0x4, scoped, tag = 'scoped memory for tpu_custom_call.1']
    #allocation4 [shape = 's32[1]{0}', space=sflag, size = 0x4, scoped, tag = 'scoped memory for tpu_custom_call.1']
    #allocation5 [shape = 'u8[131072]{0}', space=vmem, size = 0x20000, scoped, tag = 'input window, operand 1, single buffered']
    #allocation6 [shape = 's32[1]{0}', space=sflag, size = 0x4, scoped, tag = 'scoped memory for tpu_custom_call.1']
    #allocation7 [shape = 'u8[131072]{0}', space=vmem, size = 0x20000, scoped, tag = 'input window, operand 3, single buffered']
    #allocation8 [shape = 'u8[32768]{0}', space=vmem, size = 0x8000, scoped, tag = 'output window, operand 0, single buffered']
    %10 = vsyncpa [#allocation3], 0
    %11 = vsyncpa [#allocation6], 0
    %12 = vsyncpa [#allocation4], 0
    // Predicated region
    $region2: #{tpu_custom_call.1} parent=1 // pred_check
      _
    $region3: #{tpu_custom_call.1} parent=1 // pred_check_branch
      %14 = sbr.rel (0) target = $region5
    $region4: #{tpu_custom_call.1} parent=1 // pred_region
      %s16 = ssub.s32 1024, 1024
      %17 = vsyncadd [#allocation3], %s16
      %s18 = sshll.u32 [#allocation2], 4
      %s19 = int_to_ptr.vmem [resolvable:$true] %s18
      %24 = dma.hbm_to_vmem [thread:$0]  %s0, 1024, %s19, [#allocation3], 128, 128, 8
    $region5: #{tpu_custom_call.1} parent=1 // pred_fallthru
      _
    // Predicated region
    $region6: #{tpu_custom_call.1} parent=1 // pred_check
      _
    $region7: #{tpu_custom_call.1} parent=1 // pred_check_branch
      %26 = sbr.rel (0) target = $region9
    $region8: #{tpu_custom_call.1} parent=1 // pred_region
      %s28 = ssub.s32 4096, 4096
      %29 = vsyncadd [#allocation6], %s28
      %s30 = sshll.u32 [#allocation5], 4
      %s31 = int_to_ptr.vmem [resolvable:$true] %s30
      %36 = dma.hbm_to_vmem [thread:$0]  %s1, 4096, %s31, [#allocation6], 256, 256, 16
    $region9: #{tpu_custom_call.1} parent=1 // pred_fallthru
      _
    // Predicated region
    $region10: #{tpu_custom_call.1} parent=1 // pred_check
      _
    $region11: #{tpu_custom_call.1} parent=1 // pred_check_branch
      %38 = sbr.rel (0) target = $region13
    $region12: #{tpu_custom_call.1} parent=1 // pred_region
      _
    $region13: #{tpu_custom_call.1} parent=1 // pred_fallthru
      _
    // Predicated region
    $region14: #{tpu_custom_call.1} parent=1 // pred_check
      _
    $region15: #{tpu_custom_call.1} parent=1 // pred_check_branch
      %40 = sbr.rel (0) target = $region17
    $region16: #{tpu_custom_call.1} parent=1 // pred_region
      %s42 = ssub.s32 4096, 4096
      %43 = vsyncadd [#allocation6], %s42
      %s44 = sshll.u32 [#allocation7], 4
      %s45 = int_to_ptr.vmem [resolvable:$true] %s44
      %50 = dma.hbm_to_vmem [thread:$0]  %s3, 4096, %s45, [#allocation6], 128, 128, 8
    $region17: #{tpu_custom_call.1} parent=1 // pred_fallthru
      _
    // Predicated region
    $region18: #{tpu_custom_call.1} parent=1 // pred_check
      _
    $region19: #{tpu_custom_call.1} parent=1 // pred_check_branch
      %52 = sbr.rel (0) target = $region21
    $region20: #{tpu_custom_call.1} parent=1 // pred_region
      _
    $region21: #{tpu_custom_call.1} parent=1 // pred_fallthru
      _
    // Predicated region
    $region22: #{tpu_custom_call.1} parent=1 // pred_check
      _
    $region23: #{tpu_custom_call.1} parent=1 // pred_check_branch
      %54 = sbr.rel (0) target = $region25
    $region24: #{tpu_custom_call.1} parent=1 // pred_region
      %55 = dma.done [#allocation3], 1024
    $region25: #{tpu_custom_call.1} parent=1 // pred_fallthru
      _
    // Predicated region
    $region26: #{tpu_custom_call.1} parent=1 // pred_check
      _
    $region27: #{tpu_custom_call.1} parent=1 // pred_check_branch
      %57 = sbr.rel (0) target = $region29
    $region28: #{tpu_custom_call.1} parent=1 // pred_region
      %58 = dma.done [#allocation6], 4096
    $region29: #{tpu_custom_call.1} parent=1 // pred_fallthru
      _
    // Predicated region
    $region30: #{tpu_custom_call.1} parent=1 // pred_check
      _
    $region31: #{tpu_custom_call.1} parent=1 // pred_check_branch
      %60 = sbr.rel (0) target = $region33
    $region32: #{tpu_custom_call.1} parent=1 // pred_region
      %61 = dma.done [#allocation6], 4096
    $region33: #{tpu_custom_call.1} parent=1 // pred_fallthru
      _
    %v62 = vld [vmem:[#allocation2] sm:$0xff]
    %v63 = vld [vmem:[#allocation2 + $0x8] sm:$0xff]
    %v64 = vld [vmem:[#allocation2 + $0x10] sm:$0xff]
    %v65 = vld [vmem:[#allocation2 + $0x18] sm:$0xff]
    %v66 = vld [vmem:[#allocation2 + $0x20] sm:$0xff]
    %v67 = vld [vmem:[#allocation2 + $0x28] sm:$0xff]
    %v68 = vld [vmem:[#allocation2 + $0x30] sm:$0xff]
    %v69 = vld [vmem:[#allocation2 + $0x38] sm:$0xff]
    %v70 = vld [vmem:[#allocation5] sm:$0xff]
    %v71 = vld [vmem:[#allocation5 + $0x8] sm:$0xff]
    %v72 = vld [vmem:[#allocation5 + $0x10] sm:$0xff]
    %v73 = vld [vmem:[#allocation5 + $0x18] sm:$0xff]
    %v74 = vld [vmem:[#allocation5 + $0x20] sm:$0xff]
    %v75 = vld [vmem:[#allocation5 + $0x28] sm:$0xff]
    %v76 = vld [vmem:[#allocation5 + $0x30] sm:$0xff]
    %v77 = vld [vmem:[#allocation5 + $0x38] sm:$0xff]
    %v78 = vld [vmem:[#allocation5 + $0x40] sm:$0xff]
    %v79 = vld [vmem:[#allocation5 + $0x48] sm:$0xff]
    %v80 = vld [vmem:[#allocation5 + $0x50] sm:$0xff]
    %v81 = vld [vmem:[#allocation5 + $0x58] sm:$0xff]
    %v82 = vld [vmem:[#allocation5 + $0x60] sm:$0xff]
    %v83 = vld [vmem:[#allocation5 + $0x68] sm:$0xff]
    %v84 = vld [vmem:[#allocation5 + $0x70] sm:$0xff]
    %v85 = vld [vmem:[#allocation5 + $0x78] sm:$0xff]
    %v86 = vld [vmem:[#allocation5 + $0x80] sm:$0xff]
    %v87 = vld [vmem:[#allocation5 + $0x88] sm:$0xff]
    %v88 = vld [vmem:[#allocation5 + $0x90] sm:$0xff]
    %v89 = vld [vmem:[#allocation5 + $0x98] sm:$0xff]
    %v90 = vld [vmem:[#allocation5 + $0xa0] sm:$0xff]
    %v91 = vld [vmem:[#allocation5 + $0xa8] sm:$0xff]
    %v92 = vld [vmem:[#allocation5 + $0xb0] sm:$0xff]
    %v93 = vld [vmem:[#allocation5 + $0xb8] sm:$0xff]
    %v94 = vld [vmem:[#allocation5 + $0xc0] sm:$0xff]
    %v95 = vld [vmem:[#allocation5 + $0xc8] sm:$0xff]
    %v96 = vld [vmem:[#allocation5 + $0xd0] sm:$0xff]
    %v97 = vld [vmem:[#allocation5 + $0xd8] sm:$0xff]
    %v98 = vld [vmem:[#allocation5 + $0xe0] sm:$0xff]
    %v99 = vld [vmem:[#allocation5 + $0xe8] sm:$0xff]
    %v100 = vld [vmem:[#allocation5 + $0xf0] sm:$0xff]
    %v101 = vld [vmem:[#allocation5 + $0xf8] sm:$0xff]
    %v102 = vld [vmem:[%s2] sm:$0x3]
    %v104 = vlaneseq
    %v105 = vshrl.u32 %v104, 7
    %v106 = vsub.s32 0, %v105
    %v107 = vrot.slane %v102, %v106
    %v108 = vlaneseq
    %v109 = vshrl.u32 %v108, 7
    %v110 = vsub.s32 1, %v109
    %v111 = vrot.slane %v102, %v110
    %114 = vmatprep.subr.mxu0 %v71
    %115 = vmatpush1.msra.mxu0 %v70
    %116 = vmatprep.subr.mxu0 %v73
    %117 = vmatpush1.msra.mxu0 %v72
    %118 = vmatprep.subr.mxu0 %v75
    %119 = vmatpush1.msra.mxu0 %v74
    %120 = vmatprep.subr.mxu0 %v77
    %121 = vmatpush1.msra.mxu0 %v76
    %122 = vmatprep.subr.mxu0 %v79
    %123 = vmatpush1.msra.mxu0 %v78
    %124 = vmatprep.subr.mxu0 %v81
    %125 = vmatpush1.msra.mxu0 %v80
    %126 = vmatprep.subr.mxu0 %v83
    %127 = vmatpush1.msra.mxu0 %v82
    %128 = vmatprep.subr.mxu0 %v85
    %129 = vmatpush1.msra.mxu0 %v84
    %130 = vmatprep.subr.mxu0 %v87
    %131 = vmatpush1.msra.mxu0 %v86
    %132 = vmatprep.subr.mxu0 %v89
    %133 = vmatpush1.msra.mxu0 %v88
    %134 = vmatprep.subr.mxu0 %v91
    %135 = vmatpush1.msra.mxu0 %v90
    %136 = vmatprep.subr.mxu0 %v93
    %137 = vmatpush1.msra.mxu0 %v92
    %138 = vmatprep.subr.mxu0 %v95
    %139 = vmatpush1.msra.mxu0 %v94
    %140 = vmatprep.subr.mxu0 %v97
    %141 = vmatpush1.msra.mxu0 %v96
    %142 = vmatprep.subr.mxu0 %v99
    %143 = vmatpush1.msra.mxu0 %v98
    %144 = vmatprep.subr.mxu0 %v101
    %145 = vmatpush1.msra.mxu0 %v100
    %146 = vmatprep.subr.mxu0 0.0
    %147 = vmatpush1.msra.mxu0 0.0
    %148 = vmatprep.subr.mxu0 0.0
    %149 = vmatpush1.msra.mxu0 0.0
    %150 = vmatprep.subr.mxu0 0.0
    %151 = vmatpush1.msra.mxu0 0.0
    %152 = vmatprep.subr.mxu0 0.0
    %153 = vmatpush1.msra.mxu0 0.0
    %154 = vmatprep.subr.mxu0 0.0
    %155 = vmatpush1.msra.mxu0 0.0
    %156 = vmatprep.subr.mxu0 0.0
    %157 = vmatpush1.msra.mxu0 0.0
    %158 = vmatprep.subr.mxu0 0.0
    %159 = vmatpush1.msra.mxu0 0.0
    %160 = vmatprep.subr.mxu0 0.0
    %161 = vmatpush1.msra.mxu0 0.0
    %162 = vmatprep.subr.mxu0 0.0
    %163 = vmatpush1.msra.mxu0 0.0
    %164 = vmatprep.subr.mxu0 0.0
    %165 = vmatpush1.msra.mxu0 0.0
    %166 = vmatprep.subr.mxu0 0.0
    %167 = vmatpush1.msra.mxu0 0.0
    %168 = vmatprep.subr.mxu0 0.0
    %169 = vmatpush1.msra.mxu0 0.0
    %170 = vmatprep.subr.mxu0 0.0
    %171 = vmatpush1.msra.mxu0 0.0
    %172 = vmatprep.subr.mxu0 0.0
    %173 = vmatpush1.msra.mxu0 0.0
    %174 = vmatprep.subr.mxu0 0.0
    %175 = vmatpush1.msra.mxu0 0.0
    %176 = vmatprep.subr.mxu0 0.0
    %177 = vmatpush1.msra.mxu0 0.0
    %178 = vmatprep.mubr.f32.mxu0 0.0
    %179 = vmatmul.mubr.f32.gmra.mrb[0].mxu0 %v62
    %v180 = vpop.f32.mrb[0].mxu0
    %v181 = vadd.f32 %v107, %v180
    %v182 = vpop.f32.mrb[0].mxu0
    %v183 = vadd.f32 %v111, %v182
    %184 = vmatprep.mubr.f32.mxu0 0.0
    %185 = vmatmul.mubr.f32.gmra.mrb[0].mxu0 %v63
    %v186 = vpop.f32.mrb[0].mxu0
    %v187 = vadd.f32 %v107, %v186
    %v188 = vpop.f32.mrb[0].mxu0
    %v189 = vadd.f32 %v111, %v188
    %190 = vmatprep.mubr.f32.mxu0 0.0
    %191 = vmatmul.mubr.f32.gmra.mrb[0].mxu0 %v64
    %v192 = vpop.f32.mrb[0].mxu0
    %v193 = vadd.f32 %v107, %v192
    %v194 = vpop.f32.mrb[0].mxu0
    %v195 = vadd.f32 %v111, %v194
    %196 = vmatprep.mubr.f32.mxu0 0.0
    %197 = vmatmul.mubr.f32.gmra.mrb[0].mxu0 %v65
    %v198 = vpop.f32.mrb[0].mxu0
    %v199 = vadd.f32 %v107, %v198
    %v200 = vpop.f32.mrb[0].mxu0
    %v201 = vadd.f32 %v111, %v200
    %202 = vmatprep.mubr.f32.mxu0 0.0
    %203 = vmatmul.mubr.f32.gmra.mrb[0].mxu0 %v66
    %v204 = vpop.f32.mrb[0].mxu0
    %v205 = vadd.f32 %v107, %v204
    %v206 = vpop.f32.mrb[0].mxu0
    %v207 = vadd.f32 %v111, %v206
    %208 = vmatprep.mubr.f32.mxu0 0.0
    %209 = vmatmul.mubr.f32.gmra.mrb[0].mxu0 %v67
    %v210 = vpop.f32.mrb[0].mxu0
    %v211 = vadd.f32 %v107, %v210
    %v212 = vpop.f32.mrb[0].mxu0
    %v213 = vadd.f32 %v111, %v212
    %214 = vmatprep.mubr.f32.mxu0 0.0
    %215 = vmatmul.mubr.f32.gmra.mrb[0].mxu0 %v68
    %v216 = vpop.f32.mrb[0].mxu0
    %v217 = vadd.f32 %v107, %v216
    %v218 = vpop.f32.mrb[0].mxu0
    %v219 = vadd.f32 %v111, %v218
    %220 = vmatprep.mubr.f32.mxu0 0.0
    %221 = vmatmul.mubr.f32.gmra.mrb[0].mxu0 %v69
    %v222 = vpop.f32.mrb[0].mxu0
    %v223 = vadd.f32 %v107, %v222
    %v224 = vpop.f32.mrb[0].mxu0
    %v225 = vadd.f32 %v111, %v224
    %226 = vdwg.mxu0
    %v227 = vmax.f32 %v181, 0.0
    %v228 = vmax.f32 %v183, 0.0
    %v229 = vmax.f32 %v187, 0.0
    %v230 = vmax.f32 %v189, 0.0
    %v231 = vmax.f32 %v193, 0.0
    %v232 = vmax.f32 %v195, 0.0
    %v233 = vmax.f32 %v199, 0.0
    %v234 = vmax.f32 %v201, 0.0
    %v235 = vmax.f32 %v205, 0.0
    %v236 = vmax.f32 %v207, 0.0
    %v237 = vmax.f32 %v211, 0.0
    %v238 = vmax.f32 %v213, 0.0
    %v239 = vmax.f32 %v217, 0.0
    %v240 = vmax.f32 %v219, 0.0
    %v241 = vmax.f32 %v223, 0.0
    %v242 = vmax.f32 %v225, 0.0
    %v243 = vld [vmem:[#allocation7] sm:$0xff]
    %v244 = vld [vmem:[#allocation7 + $0x8] sm:$0xff]
    %v245 = vld [vmem:[#allocation7 + $0x10] sm:$0xff]
    %v246 = vld [vmem:[#allocation7 + $0x18] sm:$0xff]
    %v247 = vld [vmem:[#allocation7 + $0x20] sm:$0xff]
    %v248 = vld [vmem:[#allocation7 + $0x28] sm:$0xff]
    %v249 = vld [vmem:[#allocation7 + $0x30] sm:$0xff]
    %v250 = vld [vmem:[#allocation7 + $0x38] sm:$0xff]
    %v251 = vld [vmem:[#allocation7 + $0x40] sm:$0xff]
    %v252 = vld [vmem:[#allocation7 + $0x48] sm:$0xff]
    %v253 = vld [vmem:[#allocation7 + $0x50] sm:$0xff]
    %v254 = vld [vmem:[#allocation7 + $0x58] sm:$0xff]
    %v255 = vld [vmem:[#allocation7 + $0x60] sm:$0xff]
    %v256 = vld [vmem:[#allocation7 + $0x68] sm:$0xff]
    %v257 = vld [vmem:[#allocation7 + $0x70] sm:$0xff]
    %v258 = vld [vmem:[#allocation7 + $0x78] sm:$0xff]
    %v259 = vld [vmem:[#allocation7 + $0x80] sm:$0xff]
    %v260 = vld [vmem:[#allocation7 + $0x88] sm:$0xff]
    %v261 = vld [vmem:[#allocation7 + $0x90] sm:$0xff]
    %v262 = vld [vmem:[#allocation7 + $0x98] sm:$0xff]
    %v263 = vld [vmem:[#allocation7 + $0xa0] sm:$0xff]
    %v264 = vld [vmem:[#allocation7 + $0xa8] sm:$0xff]
    %v265 = vld [vmem:[#allocation7 + $0xb0] sm:$0xff]
    %v266 = vld [vmem:[#allocation7 + $0xb8] sm:$0xff]
    %v267 = vld [vmem:[#allocation7 + $0xc0] sm:$0xff]
    %v268 = vld [vmem:[#allocation7 + $0xc8] sm:$0xff]
    %v269 = vld [vmem:[#allocation7 + $0xd0] sm:$0xff]
    %v270 = vld [vmem:[#allocation7 + $0xd8] sm:$0xff]
    %v271 = vld [vmem:[#allocation7 + $0xe0] sm:$0xff]
    %v272 = vld [vmem:[#allocation7 + $0xe8] sm:$0xff]
    %v273 = vld [vmem:[#allocation7 + $0xf0] sm:$0xff]
    %v274 = vld [vmem:[#allocation7 + $0xf8] sm:$0xff]
    %v275 = vld [vmem:[%s4] sm:$0x1]
    %v277 = vlaneseq
    %v278 = vshrl.u32 %v277, 7
    %v279 = vsub.s32 0, %v278
    %v280 = vrot.slane %v275, %v279
    %282 = vmatprep.subr.mxu0 0.0
    %283 = vmatpush1.msra.mxu0 %v243
    %284 = vmatprep.subr.mxu0 0.0
    %285 = vmatpush1.msra.mxu0 %v244
    %286 = vmatprep.subr.mxu0 0.0
    %287 = vmatpush1.msra.mxu0 %v245
    %288 = vmatprep.subr.mxu0 0.0
    %289 = vmatpush1.msra.mxu0 %v246
    %290 = vmatprep.subr.mxu0 0.0
    %291 = vmatpush1.msra.mxu0 %v247
    %292 = vmatprep.subr.mxu0 0.0
    %293 = vmatpush1.msra.mxu0 %v248
    %294 = vmatprep.subr.mxu0 0.0
    %295 = vmatpush1.msra.mxu0 %v249
    %296 = vmatprep.subr.mxu0 0.0
    %297 = vmatpush1.msra.mxu0 %v250
    %298 = vmatprep.subr.mxu0 0.0
    %299 = vmatpush1.msra.mxu0 %v251
    %300 = vmatprep.subr.mxu0 0.0
    %301 = vmatpush1.msra.mxu0 %v252
    %302 = vmatprep.subr.mxu0 0.0
    %303 = vmatpush1.msra.mxu0 %v253
    %304 = vmatprep.subr.mxu0 0.0
    %305 = vmatpush1.msra.mxu0 %v254
    %306 = vmatprep.subr.mxu0 0.0
    %307 = vmatpush1.msra.mxu0 %v255
    %308 = vmatprep.subr.mxu0 0.0
    %309 = vmatpush1.msra.mxu0 %v256
    %310 = vmatprep.subr.mxu0 0.0
    %311 = vmatpush1.msra.mxu0 %v257
    %312 = vmatprep.subr.mxu0 0.0
    %313 = vmatpush1.msra.mxu0 %v258
    %314 = vmatprep.subr.mxu0 0.0
    %315 = vmatpush1.msra.mxu0 %v259
    %316 = vmatprep.subr.mxu0 0.0
    %317 = vmatpush1.msra.mxu0 %v260
    %318 = vmatprep.subr.mxu0 0.0
    %319 = vmatpush1.msra.mxu0 %v261
    %320 = vmatprep.subr.mxu0 0.0
    %321 = vmatpush1.msra.mxu0 %v262
    %322 = vmatprep.subr.mxu0 0.0
    %323 = vmatpush1.msra.mxu0 %v263
    %324 = vmatprep.subr.mxu0 0.0
    %325 = vmatpush1.msra.mxu0 %v264
    %326 = vmatprep.subr.mxu0 0.0
    %327 = vmatpush1.msra.mxu0 %v265
    %328 = vmatprep.subr.mxu0 0.0
    %329 = vmatpush1.msra.mxu0 %v266
    %330 = vmatprep.subr.mxu0 0.0
    %331 = vmatpush1.msra.mxu0 %v267
    %332 = vmatprep.subr.mxu0 0.0
    %333 = vmatpush1.msra.mxu0 %v268
    %334 = vmatprep.subr.mxu0 0.0
    %335 = vmatpush1.msra.mxu0 %v269
    %336 = vmatprep.subr.mxu0 0.0
    %337 = vmatpush1.msra.mxu0 %v270
    %338 = vmatprep.subr.mxu0 0.0
    %339 = vmatpush1.msra.mxu0 %v271
    %340 = vmatprep.subr.mxu0 0.0
    %341 = vmatpush1.msra.mxu0 %v272
    %342 = vmatprep.subr.mxu0 0.0
    %343 = vmatpush1.msra.mxu0 %v273
    %344 = vmatprep.subr.mxu0 0.0
    %345 = vmatpush1.msra.mxu0 %v274
    %346 = vmatprep.mubr.f32.mxu0 %v228
    %347 = vmatmul.mubr.f32.gmra.mrb[0].mxu0 %v227
    %v348 = vpop.f32.mrb[0].mxu0
    %v349 = vadd.f32 %v280, %v348
    %v350 = vpop.f32.mrb[0].mxu0
    %351 = vmatprep.mubr.f32.mxu0 %v230
    %352 = vmatmul.mubr.f32.gmra.mrb[0].mxu0 %v229
    %v353 = vpop.f32.mrb[0].mxu0
    %v354 = vadd.f32 %v280, %v353
    %v355 = vpop.f32.mrb[0].mxu0
    %356 = vmatprep.mubr.f32.mxu0 %v232
    %357 = vmatmul.mubr.f32.gmra.mrb[0].mxu0 %v231
    %v358 = vpop.f32.mrb[0].mxu0
    %v359 = vadd.f32 %v280, %v358
    %v360 = vpop.f32.mrb[0].mxu0
    %361 = vmatprep.mubr.f32.mxu0 %v234
    %362 = vmatmul.mubr.f32.gmra.mrb[0].mxu0 %v233
    %v363 = vpop.f32.mrb[0].mxu0
    %v364 = vadd.f32 %v280, %v363
    %v365 = vpop.f32.mrb[0].mxu0
    %366 = vmatprep.mubr.f32.mxu0 %v236
    %367 = vmatmul.mubr.f32.gmra.mrb[0].mxu0 %v235
    %v368 = vpop.f32.mrb[0].mxu0
    %v369 = vadd.f32 %v280, %v368
    %v370 = vpop.f32.mrb[0].mxu0
    %371 = vmatprep.mubr.f32.mxu0 %v238
    %372 = vmatmul.mubr.f32.gmra.mrb[0].mxu0 %v237
    %v373 = vpop.f32.mrb[0].mxu0
    %v374 = vadd.f32 %v280, %v373
    %v375 = vpop.f32.mrb[0].mxu0
    %376 = vmatprep.mubr.f32.mxu0 %v240
    %377 = vmatmul.mubr.f32.gmra.mrb[0].mxu0 %v239
    %v378 = vpop.f32.mrb[0].mxu0
    %v379 = vadd.f32 %v280, %v378
    %v380 = vpop.f32.mrb[0].mxu0
    %381 = vmatprep.mubr.f32.mxu0 %v242
    %382 = vmatmul.mubr.f32.gmra.mrb[0].mxu0 %v241
    %v383 = vpop.f32.mrb[0].mxu0
    %v384 = vadd.f32 %v280, %v383
    %v385 = vpop.f32.mrb[0].mxu0
    %386 = vdwg.mxu0
    %387 = vst [vmem:[#allocation8] sm:$0xff] %v349
    %388 = vst [vmem:[#allocation8 + $0x8] sm:$0xff] %v354
    %389 = vst [vmem:[#allocation8 + $0x10] sm:$0xff] %v359
    %390 = vst [vmem:[#allocation8 + $0x18] sm:$0xff] %v364
    %391 = vst [vmem:[#allocation8 + $0x20] sm:$0xff] %v369
    %392 = vst [vmem:[#allocation8 + $0x28] sm:$0xff] %v374
    %393 = vst [vmem:[#allocation8 + $0x30] sm:$0xff] %v379
    %394 = vst [vmem:[#allocation8 + $0x38] sm:$0xff] %v384
    // Predicated region
    $region34: #{tpu_custom_call.1} parent=1 // pred_check
      _
    $region35: #{tpu_custom_call.1} parent=1 // pred_check_branch
      %396 = sbr.rel (0) target = $region37
    $region36: #{tpu_custom_call.1} parent=1 // pred_region
      %s398 = ssub.s32 1024, 1024
      %399 = vsyncadd [#allocation4], %s398
      %s400 = sshll.u32 [#allocation8], 4
      %s401 = int_to_ptr.vmem [resolvable:$true] %s400
      %406 = dma.vmem_to_hbm [thread:$0]  %s401, 1024, %s5, [#allocation4], 128, 128, 8
    $region37: #{tpu_custom_call.1} parent=1 // pred_fallthru
      _
    // Predicated region
    $region38: #{tpu_custom_call.1} parent=1 // pred_check
      _
    $region39: #{tpu_custom_call.1} parent=1 // pred_check_branch
      %408 = sbr.rel (0) target = $region41
    $region40: #{tpu_custom_call.1} parent=1 // pred_region
      %409 = dma.done [#allocation4], 1024
    $region41: #{tpu_custom_call.1} parent=1 // pred_fallthru
      _
    %410 = vsyncpa [#allocation3], 1
    %411 = vsyncpa [#allocation6], 1
    %412 = vsyncpa [#allocation4], 1

</llo_original>
